<compile_context>
chip_gen: v6e
topology: v6e:2x2x1
jax: 0.10.0
libtpu: 0.0.40
codegen_flags: <defaults>
</compile_context>

<pallas_src>
import functools

import jax
import jax.numpy as jnp
from jax.experimental import pallas as pl
from jax.experimental.pallas import tpu as pltpu


def _group_shuffle_kernel(x_ref, o_ref, *, groups, cpg, use_strided):
    """Shuffle channels of one (B_TILE, C, T_TILE) block.

    out[:, i*groups + g, :] = x[:, g*cpg + i, :]
    """
    if not use_strided:
        # cpg is sublane-tile aligned for this dtype: the split/transpose/merge
        # of the channel (sublane) axis is pure vreg re-striding; the lane
        # (time) axis is untouched.
        x = x_ref[...]                                  # (Bt, C, Tt)
        bt, c, tt = x.shape
        y = x.reshape(bt, groups, cpg, tt)
        y = jnp.transpose(y, (0, 2, 1, 3))              # (Bt, Cpg, G, Tt)
        o_ref[...] = y.reshape(bt, c, tt)
    elif groups <= cpg:
        # Contiguous sublane loads, strided sublane stores (unrolled over g):
        # out rows {g, g+G, g+2G, ...}  <-  x rows {g*Cpg .. g*Cpg+Cpg-1}
        for g in range(groups):
            o_ref[:, pl.ds(g, cpg, stride=groups), :] = (
                x_ref[:, pl.ds(g * cpg, cpg), :])
    else:
        # Strided sublane loads, contiguous sublane stores (unrolled over i):
        # out rows {i*G .. i*G+G-1}  <-  x rows {i, i+Cpg, i+2*Cpg, ...}
        for i in range(cpg):
            o_ref[:, pl.ds(i * groups, groups), :] = (
                x_ref[:, pl.ds(i, groups, stride=cpg), :])


def _reference(x, groups):
    """Pure-JAX reference mirroring the PyTorch forward."""
    B, C, T = x.shape
    cpg = C // groups
    y = x.reshape(B, groups, cpg, T)
    y = jnp.transpose(y, (0, 2, 1, 3))
    return y.reshape(B, C, T)


def _largest_divisor_leq(n, cap):
    cap = int(max(1, min(n, cap)))
    for d in range(cap, 0, -1):
        if n % d == 0:
            return d
    return 1


def group_shuffle(x, groups, *, vmem_budget_bytes=16 * 1024 * 1024):
    """Pallas implementation of GroupShuffle.forward for x of shape (B, C, T)."""
    assert x.ndim == 3, "expected (batch, channels, time)"
    B, C, T = x.shape
    assert C % groups == 0, "channels must be divisible by groups"
    cpg = C // groups

    # The permutation is the identity in these degenerate cases.
    if groups == 1 or cpg == 1:
        return x

    itemsize = jnp.dtype(x.dtype).itemsize

    # Lane width < 128: every store is a masked partial store and every DMA row
    # is tiny -- a kernel cannot win this regime on any generation.
    if T < 128:
        return _reference(x, groups)

    # ---------------- tile selection (memory-bound streaming copy) ----------
    # Per grid step: (input + output) x double-buffering = 4 blocks in VMEM.
    block_budget = vmem_budget_bytes // 4
    row_bytes = C * itemsize
    max_t = max(128, (block_budget // row_bytes) // 128 * 128)
    t_tile = T if T <= max_t else max_t
    grid_t = pl.cdiv(T, t_tile)

    # Coalesce batch into the block while it still fits the per-block budget
    # (restores large, efficient DMAs for small-C / small-T layers).
    per_batch_bytes = C * t_tile * itemsize
    b_tile = _largest_divisor_leq(B, max(1, block_budget // per_batch_bytes))
    grid_b = B // b_tile

    # v7x has two TensorCores: make sure there are >= 2 parallel grid steps.
    if grid_b * grid_t < 2 and T >= 256:
        half = (T + 1) // 2
        t_tile = ((half + 127) // 128) * 128
        grid_t = pl.cdiv(T, t_tile)

    # Raise the scoped VMEM limit to cover the (possibly C-forced) footprint;
    # 32 MiB also lifts v5e's 16 MiB scoped default.
    vmem_needed = 4 * b_tile * C * t_tile * itemsize
    vmem_limit = int(max(32 * 1024 * 1024, vmem_needed + (4 << 20)))

    # Sublane tile per dtype: 8 (f32) / 16 (bf16) / 32 (int8).
    sublane = max(1, 32 // itemsize)
    aligned = (cpg % sublane) == 0
    # TODO(synk): sub-32-bit dtypes with unaligned cpg keep the reshape/transpose
    #             (Mosaic relayout) path; strided sublane stores on packed
    #             dtypes are not guaranteed to lower.
    use_strided = (not aligned) and itemsize == 4

    kernel = functools.partial(
        _group_shuffle_kernel, groups=groups, cpg=cpg, use_strided=use_strided)

    return pl.pallas_call(
        kernel,
        out_shape=jax.ShapeDtypeStruct((B, C, T), x.dtype),
        grid_spec=pltpu.PrefetchScalarGridSpec(
            num_scalar_prefetch=0,
            grid=(grid_b, grid_t),
            in_specs=[pl.BlockSpec((b_tile, C, t_tile), lambda b, t: (b, 0, t))],
            out_specs=pl.BlockSpec((b_tile, C, t_tile), lambda b, t: (b, 0, t)),
        ),
        compiler_params=pltpu.CompilerParams(
            dimension_semantics=("parallel", "parallel"),
            vmem_limit_bytes=vmem_limit),
        cost_estimate=pl.CostEstimate(
            flops=0, transcendentals=0,
            bytes_accessed=2 * B * C * T * itemsize),
    )(x)


if __name__ == "__main__":
    key = jax.random.PRNGKey(0)
    k1, k2, k3, k4, k5 = jax.random.split(key, 5)

    # Case 1: f32, cpg=8 (sublane-aligned) -> free reshape/transpose path,
    #         batch-coalesced block, two lane-dense time tiles.
    x1 = jax.random.normal(k1, (2, 32, 256), dtype=jnp.float32)
    o1 = group_shuffle(x1, 4)
    jax.block_until_ready(o1)
    assert jnp.array_equal(o1, _reference(x1, 4))

    # Case 2: f32, cpg=6 (unaligned) -> strided-sublane-store path, padded
    #         trailing time tile (T=384, t_tile=256).
    x2 = jax.random.normal(k2, (2, 24, 384), dtype=jnp.float32)
    o2 = group_shuffle(x2, 4)
    jax.block_until_ready(o2)
    assert jnp.array_equal(o2, _reference(x2, 4))

    # Case 3: f32, groups > cpg -> strided-sublane-load path.
    x3 = jax.random.normal(k3, (2, 16, 128), dtype=jnp.float32)
    o3 = group_shuffle(x3, 8)
    jax.block_until_ready(o3)
    assert jnp.array_equal(o3, _reference(x3, 8))

    # Case 4: bf16, cpg=16 (aligned for bf16) -> free path at 2-byte dtype.
    x4 = jax.random.normal(k4, (2, 64, 256), dtype=jnp.bfloat16)
    o4 = group_shuffle(x4, 4)
    jax.block_until_ready(o4)
    assert jnp.array_equal(o4, _reference(x4, 4))

    # Case 5: tiny T -> pure-XLA fallback (kernel can't win lane width < 128).
    x5 = jax.random.normal(k5, (2, 8, 16), dtype=jnp.float32)
    o5 = group_shuffle(x5, 2)
    jax.block_until_ready(o5)
    assert jnp.array_equal(o5, _reference(x5, 2))

    print("KERNEL_OK")
</pallas_src>

<mosaic_0001>
module attributes {stable_mosaic.version = 11 : i64} {
  func.func @_group_shuffle_kernel(%arg0: i32, %arg1: i32, %arg2: memref<2x32x128xf32, #tpu.memory_space<vmem>>, %arg3: memref<2x32x128xf32, #tpu.memory_space<vmem>>) attributes {dimension_semantics = [#tpu.dimension_semantics<parallel>, #tpu.dimension_semantics<parallel>], iteration_bounds = array<i64: 1, 2>, scalar_prefetch = 0 : i64, scratch_operands = 0 : i64, tpu.core_type = #tpu.core_type<tc>, window_params = [{transform_indices = @transform_0, window_bounds = array<i64: 2, 32, 128>}, {transform_indices = @transform_1, window_bounds = array<i64: 2, 32, 128>}]} {
    %c0 = arith.constant 0 : index
    %c0_0 = arith.constant 0 : index
    %c0_1 = arith.constant 0 : index
    %0 = vector.load %arg2[%c0, %c0_0, %c0_1] : memref<2x32x128xf32, #tpu.memory_space<vmem>>, vector<2x32x128xf32>
    %1 = vector.shape_cast %0 : vector<2x32x128xf32> to vector<2x4x8x128xf32>
    %2 = tpu.transpose %1, [0, 2, 1, 3] : vector<2x4x8x128xf32> -> vector<2x8x4x128xf32>
    %3 = vector.shape_cast %2 : vector<2x8x4x128xf32> to vector<2x32x128xf32>
    %c0_2 = arith.constant 0 : index
    %c0_3 = arith.constant 0 : index
    %c0_4 = arith.constant 0 : index
    %4 = vector.load %arg3[%c0_2, %c0_3, %c0_4] : memref<2x32x128xf32, #tpu.memory_space<vmem>>, vector<2x32x128xf32>
    tpu.vector_store %arg3[%c0_2, %c0_3, %c0_4], %3 {strides = array<i32>} : memref<2x32x128xf32, #tpu.memory_space<vmem>>, vector<2x32x128xf32>,
    return
  }
  func.func @transform_0(%arg0: i32, %arg1: i32) -> (i32, i32, i32) {
    %c0_i32 = arith.constant 0 : i32
    %c0_i32_0 = arith.constant 0 : i32
    return %arg0, %c0_i32, %arg1 : i32, i32, i32
  }
  func.func @transform_1(%arg0: i32, %arg1: i32) -> (i32, i32, i32) {
    %c0_i32 = arith.constant 0 : i32
    %c0_i32_0 = arith.constant 0 : i32
    return %arg0, %c0_i32, %arg1 : i32, i32, i32
  }
}

</mosaic_0001>

<llo_original>
// kernel: tpu_custom_call.1
$region0: #{tpu_custom_call.1}
  #allocation0 [shape = 'u32[]', space=smem, size = 0x4, offset = 0x4, fixed_abs, tag = 'smem constant byte address 0x4 - core index']
  #allocation1 [shape = 'u32[144,128]{1,0:T(1,128)}', space=vmem, size = 0x12000, scoped, tag = 'internal scratch']
  %s0 = inlined_call_operand.hbm [shape: f32[2,32,256], index: 0, kind: input, shape index: {}]
  %s1 = inlined_call_operand.hbm [shape: f32[2,32,256], index: 1, kind: output, shape index: {}]
  %s2 = sld [smem:[#allocation0]]
  $region41: #{tpu_custom_call.1} parent=0
    _
  %s4 = ssub.s32 1, %s2
  %s5 = scalar_select 0, %s4, %s2
  $region1: #{tpu_custom_call.1} parent=0
    #allocation2 [shape = 'u8[65536]{0}', space=vmem, size = 0x10000, scoped, tag = 'input window, operand 0']
    #allocation3 [shape = 's32[2]{0}', space=sflag, size = 0x8, scoped, tag = 'scoped memory for tpu_custom_call.1']
    #allocation4 [shape = 's32[2]{0}', space=sflag, size = 0x8, scoped, tag = 'scoped memory for tpu_custom_call.1']
    #allocation5 [shape = 'u8[65536]{0}', space=vmem, size = 0x10000, scoped, tag = 'output window, operand 0']
    %6 = vsyncpa [#allocation3], 0
    %s7 = scalar_lea.sflag [#allocation3], 1
    %8 = vsyncpa %s7, 0
    %9 = vsyncpa [#allocation4], 0
    %s10 = scalar_lea.sflag [#allocation4], 1
    %11 = vsyncpa %s10, 0
    loop: start=0, step=1, limit=4
    $region2: #{tpu_custom_call.1} parent=1 // loop_pre_header
      _
    $region3: #{tpu_custom_call.1} parent=1 // loop_header
      %s13 = sphi 0, %s17
      %p14 = scmp.ge.s32.totalorder %s13, 4
      %s20 = sphi 0, %s32
      %s21 = sphi 0, %s28
      %s22 = sphi 0, %s20
      %s23 = sphi 0, %s21
      %s24 = sphi 0, %s22
      %s25 = sphi 0, %s23
      %s37 = sphi 0, %s39
      %s40 = sphi 0, %s37
      %s41 = sphi 0, %s40
      %s57 = sphi 0, %s41
      %s65 = sphi 0, %s67
      %s68 = sphi 0, %s65
      %s69 = sphi 0, %s68
      %s85 = sphi 0, %s69
    $region4: #{tpu_custom_call.1} parent=1 // loop_header_branch
      %16 = sbr.rel (%p14) target = $region8
    $region5: #{tpu_custom_call.1} parent=1 // loop_body
      %s18 = ssub.s32 %s13, 1
      %s19 = ssub.s32 %s13, 2
      %s26 = sadd.s32 1, %s21
      %p27 = scmp.ge.s32.totalorder %s26, 2
      %s28 = scalar_select %p27, 0, %s26
      %s29 = sadd.s32 1, %s20
      %s30 = scalar_select %p27, %s29, %s20
      %p31 = scmp.ge.s32.totalorder %s30, 1
      %s32 = scalar_select %p31, 0, %s30
      %s33 = ssub.s32 %s20, %s32
      %s34 = ssub.s32 %s21, %s28
      %s35 = sor.u32 %s33, %s34
      %p36 = scmp.eq.s32.totalorder %s35, 0
      %s38 = sadd.s32 %s37, 1
      %s39 = scalar_select %p36, %s37, %s38
      %p42 = pneg %p36
      %p43 = scmp.eq.s32.totalorder %s13, 1
      %p44 = por %p42, %p43
      %p45 = scmp.ne.s32.totalorder %s37, %s40
      %p46 = scmp.eq.s32.totalorder %s13, 0
      %p47 = por %p45, %p46
      %p48 = scmp.ne.s32.totalorder %s37, %s40
      %p49 = scmp.eq.s32.totalorder %s18, 1
      %p50 = por %p48, %p49
      %p51 = scmp.ne.s32.totalorder %s40, %s41
      %p52 = scmp.eq.s32.totalorder %s18, 0
      %p53 = por %p51, %p52
      %p54 = scmp.ne.s32.totalorder %s40, %s41
      %p55 = scmp.eq.s32.totalorder %s19, 1
      %p56 = por %p54, %p55
      %p58 = scmp.ne.s32.totalorder %s41, %s57
      %p59 = scmp.eq.s32.totalorder %s19, 0
      %p60 = por %p58, %p59
      %s61 = ssub.s32 %s20, %s32
      %s62 = ssub.s32 %s21, %s28
      %s63 = sor.u32 %s61, %s62
      %p64 = scmp.eq.s32.totalorder %s63, 0
      %s66 = sadd.s32 %s65, 1
      %s67 = scalar_select %p64, %s65, %s66
      %p70 = pneg %p64
      %p71 = scmp.eq.s32.totalorder %s13, 1
      %p72 = por %p70, %p71
      %p73 = scmp.ne.s32.totalorder %s65, %s68
      %p74 = scmp.eq.s32.totalorder %s13, 0
      %p75 = por %p73, %p74
      %p76 = scmp.ne.s32.totalorder %s65, %s68
      %p77 = scmp.eq.s32.totalorder %s18, 1
      %p78 = por %p76, %p77
      %p79 = scmp.ne.s32.totalorder %s68, %s69
      %p80 = scmp.eq.s32.totalorder %s18, 0
      %p81 = por %p79, %p80
      %p82 = scmp.ne.s32.totalorder %s68, %s69
      %p83 = scmp.eq.s32.totalorder %s19, 1
      %p84 = por %p82, %p83
      %p86 = scmp.ne.s32.totalorder %s69, %s85
      %p87 = scmp.eq.s32.totalorder %s19, 0
      %p88 = por %p86, %p87
      %p89 = scmp.le.s32.totalorder 1, %s13
      %p90 = scmp.lt.s32.totalorder %s13, 3
      %p91 = pnand %p89, %p90
      %p92 = pneg %p91
      // Predicated region
      $region9: #{tpu_custom_call.1} parent=5 // pred_check
        _
      $region10: #{tpu_custom_call.1} parent=5 // pred_check_branch
        %94 = sbr.rel (%p91) target = $region12
      $region11: #{tpu_custom_call.1} parent=5 // pred_region
        %s95 = ssub.s32 %s13, 1
      $region12: #{tpu_custom_call.1} parent=5 // pred_fallthru
        _
      %p96 = scmp.lt.s32.totalorder %s13, 2
      // Predicated region
      $region13: #{tpu_custom_call.1} parent=5 // pred_check
        %p97 = pneg %p96
      $region14: #{tpu_custom_call.1} parent=5 // pred_check_branch
        %99 = sbr.rel (%p97) target = $region16
      $region15: #{tpu_custom_call.1} parent=5 // pred_region
        // Predicated region
        $region17: #{tpu_custom_call.1} parent=15 // pred_check
          %p100 = pneg %p47
        $region18: #{tpu_custom_call.1} parent=15 // pred_check_branch
          %102 = sbr.rel (%p100) target = $region20
        $region19: #{tpu_custom_call.1} parent=15 // pred_region
          %s103 = sand.u32 %s37, 1
          %s104 = scalar_lea.sflag [#allocation3], %s103
          %s105 = sand.u32 %s37, 1
          %s106 = smul.addr %s105, 64
          %s107 = scalar_lea.vmem [#allocation2], %s106
          %s108 = smul.u32 2, %s20
          %s110 = ssub.s32 1024, 1024
          %111 = vsyncadd %s104, %s110
          %s112 = smul.addr %s108, 8
          %s113 = sadd.s32 %s21, %s112
          %s114 = smul.addr %s113, 128
          %s115 = scalar_lea.hbm %s0, %s114
          %s116 = sshll.u32 %s107, 4
          %s117 = int_to_ptr.vmem [resolvable:$true] %s116
          %122 = dma.hbm_to_vmem [thread:$0]  %s115, 1024, %s117, %s104, 256, 128, 8
        $region20: #{tpu_custom_call.1} parent=15 // pred_fallthru
          _
      $region16: #{tpu_custom_call.1} parent=5 // pred_fallthru
        _
      %p123 = scmp.le.s32.totalorder 1, %s13
      %p124 = scmp.lt.s32.totalorder %s13, 3
      %p125 = pnand %p123, %p124
      %p126 = pneg %p125
      // Predicated region
      $region21: #{tpu_custom_call.1} parent=5 // pred_check
        _
      $region22: #{tpu_custom_call.1} parent=5 // pred_check_branch
        %128 = sbr.rel (%p125) target = $region24
      $region23: #{tpu_custom_call.1} parent=5 // pred_region
        %s129 = ssub.s32 %s13, 1
        %s130 = sand.u32 %s40, 1
        %s131 = scalar_lea.sflag [#allocation3], %s130
        %s132 = sand.u32 %s40, 1
        %s133 = smul.addr %s132, 64
        %s134 = scalar_lea.vmem [#allocation2], %s133
        // Predicated region
        $region25: #{tpu_custom_call.1} parent=23 // pred_check
          %p135 = pneg %p53
        $region26: #{tpu_custom_call.1} parent=23 // pred_check_branch
          %137 = sbr.rel (%p135) target = $region28
        $region27: #{tpu_custom_call.1} parent=23 // pred_region
          %138 = dma.done %s131, 1024
        $region28: #{tpu_custom_call.1} parent=23 // pred_fallthru
          _
        %s139 = sand.u32 %s40, 1
        %s140 = scalar_lea.sflag [#allocation3], %s139
        %s141 = sand.u32 %s40, 1
        %s142 = smul.addr %s141, 64
        %s143 = scalar_lea.vmem [#allocation2], %s142
        %p144 = pneg %p53
        %p145 = pneg %p50
        %p146 = pneg %p81
        %p147 = pneg %p78
        %s148 = sand.u32 %s68, 1
        %s149 = scalar_lea.sflag [#allocation4], %s148
        %s150 = sand.u32 %s68, 1
        %s151 = smul.addr %s150, 64
        %s152 = scalar_lea.vmem [#allocation5], %s151
        %s153 = smul.u32 2, %s22
        %s154 = smul.u32 2, %s22
        %v155 = vld [vmem:[%s134] sm:$0xff]
        %v156 = vld [vmem:[%s134 + $0x8] sm:$0xff]
        %v157 = vld [vmem:[%s134 + $0x10] sm:$0xff]
        %v158 = vld [vmem:[%s134 + $0x18] sm:$0xff]
        %v159 = vld [vmem:[%s134 + $0x20] sm:$0xff]
        %v160 = vld [vmem:[%s134 + $0x28] sm:$0xff]
        %v161 = vld [vmem:[%s134 + $0x30] sm:$0xff]
        %v162 = vld [vmem:[%s134 + $0x38] sm:$0xff]
        %v163 = vcombine.low %v155, %v157
        %v164 = vcombine.high %v155, %v157
        %v166 = vunpack.c.l.s4 1983009808
        %v167 = vunpack.c.0.s8 %v166
        %v168 = vlaneseq
        %v169 = vshrl.u32 %v168, 7
        %v170 = vsub.s32 %v167, %v169
        %v171 = vrot.slane %v163, %v170
        %v173 = vunpack.c.l.s4 1983009808
        %v174 = vunpack.c.0.s8 %v173
        %v175 = vlaneseq
        %v176 = vshrl.u32 %v175, 7
        %v177 = vsub.s32 %v174, %v176
        %v178 = vrot.slane %v164, %v177
        %v179 = vcombine.low %v156, %v158
        %v180 = vcombine.high %v156, %v158
        %v182 = vunpack.c.l.s4 1983009808
        %v183 = vunpack.c.0.s8 %v182
        %v184 = vlaneseq
        %v185 = vshrl.u32 %v184, 7
        %v186 = vsub.s32 %v183, %v185
        %v187 = vrot.slane %v179, %v186
        %v189 = vunpack.c.l.s4 1983009808
        %v190 = vunpack.c.0.s8 %v189
        %v191 = vlaneseq
        %v192 = vshrl.u32 %v191, 7
        %v193 = vsub.s32 %v190, %v192
        %v194 = vrot.slane %v180, %v193
        %v195 = vcombine.low %v171, %v187
        %v196 = vcombine.high %v171, %v187
        %v198 = vunpack.c.l.s4 1934713408
        %v199 = vunpack.c.0.s8 %v198
        %v200 = vlaneseq
        %v201 = vshrl.u32 %v200, 7
        %v202 = vsub.s32 %v199, %v201
        %v203 = vrot.slane %v195, %v202
        %v205 = vunpack.c.l.s4 1934713408
        %v206 = vunpack.c.0.s8 %v205
        %v207 = vlaneseq
        %v208 = vshrl.u32 %v207, 7
        %v209 = vsub.s32 %v206, %v208
        %v210 = vrot.slane %v196, %v209
        %v211 = vcombine.low %v178, %v194
        %v212 = vcombine.high %v178, %v194
        %v214 = vunpack.c.l.s4 1934713408
        %v215 = vunpack.c.0.s8 %v214
        %v216 = vlaneseq
        %v217 = vshrl.u32 %v216, 7
        %v218 = vsub.s32 %v215, %v217
        %v219 = vrot.slane %v211, %v218
        %v221 = vunpack.c.l.s4 1934713408
        %v222 = vunpack.c.0.s8 %v221
        %v223 = vlaneseq
        %v224 = vshrl.u32 %v223, 7
        %v225 = vsub.s32 %v222, %v224
        %v226 = vrot.slane %v212, %v225
        %v227 = vcombine.high %v203, 0.0
        %v228 = vcombine.high %v210, 0.0
        %v229 = vcombine.high %v219, 0.0
        %v230 = vcombine.high %v226, 0.0
        %v231 = vcombine.low %v159, %v161
        %v232 = vcombine.high %v159, %v161
        %v234 = vunpack.c.l.s4 1983009808
        %v235 = vunpack.c.0.s8 %v234
        %v236 = vlaneseq
        %v237 = vshrl.u32 %v236, 7
        %v238 = vsub.s32 %v235, %v237
        %v239 = vrot.slane %v231, %v238
        %v241 = vunpack.c.l.s4 1983009808
        %v242 = vunpack.c.0.s8 %v241
        %v243 = vlaneseq
        %v244 = vshrl.u32 %v243, 7
        %v245 = vsub.s32 %v242, %v244
        %v246 = vrot.slane %v232, %v245
        %v247 = vcombine.low %v160, %v162
        %v248 = vcombine.high %v160, %v162
        %v250 = vunpack.c.l.s4 1983009808
        %v251 = vunpack.c.0.s8 %v250
        %v252 = vlaneseq
        %v253 = vshrl.u32 %v252, 7
        %v254 = vsub.s32 %v251, %v253
        %v255 = vrot.slane %v247, %v254
        %v257 = vunpack.c.l.s4 1983009808
        %v258 = vunpack.c.0.s8 %v257
        %v259 = vlaneseq
        %v260 = vshrl.u32 %v259, 7
        %v261 = vsub.s32 %v258, %v260
        %v262 = vrot.slane %v248, %v261
        %v263 = vcombine.low %v239, %v255
        %v264 = vcombine.high %v239, %v255
        %v266 = vunpack.c.l.s4 1934713408
        %v267 = vunpack.c.0.s8 %v266
        %v268 = vlaneseq
        %v269 = vshrl.u32 %v268, 7
        %v270 = vsub.s32 %v267, %v269
        %v271 = vrot.slane %v263, %v270
        %v273 = vunpack.c.l.s4 1934713408
        %v274 = vunpack.c.0.s8 %v273
        %v275 = vlaneseq
        %v276 = vshrl.u32 %v275, 7
        %v277 = vsub.s32 %v274, %v276
        %v278 = vrot.slane %v264, %v277
        %v279 = vcombine.low %v246, %v262
        %v280 = vcombine.high %v246, %v262
        %v282 = vunpack.c.l.s4 1934713408
        %v283 = vunpack.c.0.s8 %v282
        %v284 = vlaneseq
        %v285 = vshrl.u32 %v284, 7
        %v286 = vsub.s32 %v283, %v285
        %v287 = vrot.slane %v279, %v286
        %v289 = vunpack.c.l.s4 1934713408
        %v290 = vunpack.c.0.s8 %v289
        %v291 = vlaneseq
        %v292 = vshrl.u32 %v291, 7
        %v293 = vsub.s32 %v290, %v292
        %v294 = vrot.slane %v280, %v293
        %v295 = vcombine.high %v271, 0.0
        %v296 = vcombine.high %v278, 0.0
        %v297 = vcombine.high %v287, 0.0
        %v298 = vcombine.high %v294, 0.0
        %v315 = vcombine.low %v203, %v227
        %v316 = vcombine.low %v210, %v228
        %v317 = vcombine.low %v219, %v229
        %v318 = vcombine.low %v226, %v230
        %v319 = vcombine.low %v271, %v295
        %v320 = vcombine.low %v278, %v296
        %v321 = vcombine.low %v287, %v297
        %v322 = vcombine.low %v294, %v298
        %331 = vst [vmem:[%s152] sm:$0xff] %v315
        %332 = vst [vmem:[%s152 + $0x8] sm:$0xff] %v316
        %333 = vst [vmem:[%s152 + $0x10] sm:$0xff] %v317
        %334 = vst [vmem:[%s152 + $0x18] sm:$0xff] %v318
        %335 = vst [vmem:[%s152 + $0x20] sm:$0xff] %v319
        %336 = vst [vmem:[%s152 + $0x28] sm:$0xff] %v320
        %337 = vst [vmem:[%s152 + $0x30] sm:$0xff] %v321
        %338 = vst [vmem:[%s152 + $0x38] sm:$0xff] %v322
        %s339 = sand.u32 %s68, 1
        %s340 = scalar_lea.sflag [#allocation4], %s339
        %s341 = sand.u32 %s68, 1
        %s342 = smul.addr %s341, 64
        %s343 = scalar_lea.vmem [#allocation5], %s342
        // Predicated region
        $region29: #{tpu_custom_call.1} parent=23 // pred_check
          %p344 = pneg %p78
        $region30: #{tpu_custom_call.1} parent=23 // pred_check_branch
          %346 = sbr.rel (%p344) target = $region32
        $region31: #{tpu_custom_call.1} parent=23 // pred_region
          %s347 = smul.u32 2, %s22
          %s349 = ssub.s32 1024, 1024
          %350 = vsyncadd %s340, %s349
          %s351 = smul.addr %s347, 8
          %s352 = sadd.s32 %s23, %s351
          %s353 = smul.addr %s352, 128
          %s354 = scalar_lea.hbm %s1, %s353
          %s355 = sshll.u32 %s343, 4
          %s356 = int_to_ptr.vmem [resolvable:$true] %s355
          %361 = dma.vmem_to_hbm [thread:$0]  %s356, 1024, %s354, %s340, 128, 256, 8
        $region32: #{tpu_custom_call.1} parent=23 // pred_fallthru
          _
      $region24: #{tpu_custom_call.1} parent=5 // pred_fallthru
        _
      %p362 = scmp.le.s32.totalorder 2, %s13
      // Predicated region
      $region33: #{tpu_custom_call.1} parent=5 // pred_check
        %p363 = pneg %p362
      $region34: #{tpu_custom_call.1} parent=5 // pred_check_branch
        %365 = sbr.rel (%p363) target = $region36
      $region35: #{tpu_custom_call.1} parent=5 // pred_region
        %s366 = ssub.s32 %s13, 2
        // Predicated region
        $region37: #{tpu_custom_call.1} parent=35 // pred_check
          %p367 = pneg %p84
        $region38: #{tpu_custom_call.1} parent=35 // pred_check_branch
          %369 = sbr.rel (%p367) target = $region40
        $region39: #{tpu_custom_call.1} parent=35 // pred_region
          %s370 = sand.u32 %s69, 1
          %s371 = scalar_lea.sflag [#allocation4], %s370
          %s372 = sand.u32 %s69, 1
          %s373 = smul.addr %s372, 64
          %s374 = scalar_lea.vmem [#allocation5], %s373
          %375 = dma.done %s371, 1024
        $region40: #{tpu_custom_call.1} parent=35 // pred_fallthru
          _
      $region36: #{tpu_custom_call.1} parent=5 // pred_fallthru
        _
    $region6: #{tpu_custom_call.1} parent=1 // loop_footer
      %s17 = sadd.s32 1, %s13
    $region7: #{tpu_custom_call.1} parent=1 // loop_footer_branch
      %12 = sbr.rel target = $region3
    $region8: #{tpu_custom_call.1} parent=1 // loop_exit
      _
    %376 = vsyncpa [#allocation3], 1
    %s377 = scalar_lea.sflag [#allocation3], 1
    %378 = vsyncpa %s377, 1
    %379 = vsyncpa [#allocation4], 1
    %s380 = scalar_lea.sflag [#allocation4], 1
    %381 = vsyncpa %s380, 1

</llo_original>
